<compile_context>
chip_gen: v5e
topology: v5e:2x2
jax: 0.10.0
libtpu: 0.0.40
codegen_flags: <defaults>
</compile_context>

<pallas_src>
import functools

import jax
import jax.numpy as jnp
from jax.experimental import pallas as pl
from jax.experimental.pallas import tpu as pltpu


_LANE = 128
# Row-count alignment for block shapes: LCM of sublane packing up through
# 4-bit dtypes (8 for f32, 16 for bf16, 32 for int8/fp8, 64 for int4/fp4).
_ROW_ALIGN = 64
# Arrays at least this large are split into >= _MIN_SPLIT_BLOCKS grid steps.
_MIN_SPLIT_BYTES = 512 * 1024
_MIN_SPLIT_BLOCKS = 4
# Odd (non-multiple-of-128) arrays up to this many bytes use one whole block.
_ODD_SINGLE_BLOCK_MAX_BYTES = 512 * 1024

# Conservative defaults if the hardware query is unavailable (safe on v7x's
# 64 MiB physical VMEM and everything bigger).
_DEFAULT_BLOCK_BYTES = 8 * 1024 * 1024
_DEFAULT_VMEM_LIMIT_BYTES = 48 * 1024 * 1024


def _identity_kernel(x_ref, o_ref):
    # Elementwise identity: copy the VMEM tile straight to the output tile.
    o_ref[...] = x_ref[...]


@functools.cache
def _tpu_budget():
    """(block_bytes, vmem_limit_bytes) derived from the chip generation."""
    try:
        cap = int(pltpu.get_tpu_info().vmem_capacity_bytes)
    except Exception:  # older jax / interpret mode / query unavailable
        return _DEFAULT_BLOCK_BYTES, _DEFAULT_VMEM_LIMIT_BYTES
    if cap >= 96 * 1024 * 1024:
        # v5e / v6e class (128 MiB physical): plenty of headroom.
        return 8 * 1024 * 1024, 64 * 1024 * 1024
    # v7x class (64 MiB physical): 8 MiB blocks, 48 MiB scoped limit.
    return 8 * 1024 * 1024, 48 * 1024 * 1024


def _choose_tile_rows(rows: int, lane: int, itemsize: int, block_bytes: int) -> int:
    """Rows per block: ~block_bytes, aligned, but >= _MIN_SPLIT_BLOCKS blocks
    for anything bigger than a few hundred KiB (pipelining + multi-core)."""
    tile = max(_ROW_ALIGN, (block_bytes // (lane * itemsize)) // _ROW_ALIGN * _ROW_ALIGN)
    total_bytes = rows * lane * itemsize
    if total_bytes >= _MIN_SPLIT_BYTES:
        split = pl.cdiv(pl.cdiv(rows, _MIN_SPLIT_BLOCKS), _ROW_ALIGN) * _ROW_ALIGN
        tile = min(tile, split)
    if tile >= rows:
        tile = rows  # single block covering the full array: always legal
    return tile


def _identity_2d(x2d: jax.Array, *, donate_input: bool) -> jax.Array:
    """Copy a (rows, 128) lane-dense slab through VMEM."""
    rows, lane = x2d.shape
    itemsize = jnp.dtype(x2d.dtype).itemsize
    block_bytes, vmem_limit = _tpu_budget()
    tile_rows = _choose_tile_rows(rows, lane, itemsize, block_bytes)
    grid = (pl.cdiv(rows, tile_rows),)

    return pl.pallas_call(
        _identity_kernel,
        out_shape=jax.ShapeDtypeStruct((rows, lane), x2d.dtype),
        grid_spec=pltpu.PrefetchScalarGridSpec(
            num_scalar_prefetch=0,
            grid=grid,
            in_specs=[pl.BlockSpec((tile_rows, lane), lambda i: (i, 0))],
            out_specs=pl.BlockSpec((tile_rows, lane), lambda i: (i, 0)),
        ),
        compiler_params=pltpu.CompilerParams(
            # NOTE(v7x): try (pltpu.CORE_PARALLEL,) here to force the grid axis
            # across both TensorCores; "parallel" is the safe default.
            dimension_semantics=("parallel",),
            vmem_limit_bytes=vmem_limit,
        ),
        cost_estimate=pl.CostEstimate(
            flops=0,
            transcendentals=0,
            bytes_accessed=2 * rows * lane * itemsize,
        ),
        # Safe only because in/out index_maps and block shapes are identical
        # (block i-1 write-back never overlaps the block i+1 prefetch window's
        # *data change* — the data is unchanged).  Revisit if this ever stops
        # being a pure copy.
        input_output_aliases={0: 0} if donate_input else {},
    )(x2d)


def _identity_whole_block(x2d: jax.Array, *, donate_input: bool) -> jax.Array:
    """Single whole-array block (block shape == full dims, so any last dim is
    legal).  Used for small arrays whose flat size is not a multiple of 128."""
    _, vmem_limit = _tpu_budget()
    return pl.pallas_call(
        _identity_kernel,
        out_shape=jax.ShapeDtypeStruct(x2d.shape, x2d.dtype),
        compiler_params=pltpu.CompilerParams(vmem_limit_bytes=vmem_limit),
        input_output_aliases={0: 0} if donate_input else {},
    )(x2d)


def identity_activation(
    x: jax.Array, *, donate_input: bool = False, skip_kernel: bool = False
) -> jax.Array:
    """Identity forward pass implemented as a Pallas TPU copy kernel.

    Accepts any shape/dtype; returns a tensor identical to the input.

    Call under jax.jit with default row-major layouts so the surrounding
    reshapes are metadata-only and HBM traffic is exactly one read + one write.
    Set donate_input=True (and donate x at the jit boundary) to let XLA alias
    the output onto the input buffer (saves the output allocation, not
    bandwidth).  Set skip_kernel=True to return x directly (zero HBM traffic —
    the true optimum for identity); the kernel path exists because this
    exercise mandates an explicit Pallas kernel.
    """
    if skip_kernel or x.size == 0:
        return x

    orig_shape = x.shape
    n = x.size
    itemsize = jnp.dtype(x.dtype).itemsize

    if n % _LANE == 0:
        # Fast path (common case for activations): lane-dense (rows, 128) view.
        x2d = jnp.reshape(x, (n // _LANE, _LANE))
        out2d = _identity_2d(x2d, donate_input=donate_input)
        return jnp.reshape(out2d, orig_shape)

    if n * itemsize <= _ODD_SINGLE_BLOCK_MAX_BYTES:
        # Small odd size: one whole-array block, no padding, no extra passes.
        out2d = _identity_whole_block(
            jnp.reshape(x, (1, n)), donate_input=donate_input
        )
        return jnp.reshape(out2d, orig_shape)

    # TODO(synk): rare large-and-odd fallback still pads + slices (two extra
    # HBM passes); a masked 1-D partial-block store would cut the extra traffic
    # to O(128) elements, left out here in favor of the known-good lowering.
    n_pad = pl.cdiv(n, _LANE) * _LANE
    x_flat = jnp.pad(jnp.ravel(x), (0, n_pad - n))
    out2d = _identity_2d(
        jnp.reshape(x_flat, (n_pad // _LANE, _LANE)), donate_input=False
    )
    return jnp.reshape(jnp.ravel(out2d)[:n], orig_shape)


if __name__ == "__main__":
    key = jax.random.PRNGKey(0)
    # Small NCHW-shaped example input, consistent with typical conv activations.
    x = jax.random.normal(key, (2, 4, 16, 16), dtype=jnp.float32)

    # Default fast path (single block, full-array block shape).
    y = jax.block_until_ready(identity_activation(x))
    assert y.shape == x.shape and y.dtype == x.dtype
    assert bool(jnp.all(y == x))

    # Multi-block path: 8 MiB f32 -> >= 4 grid steps (exercises the grid split
    # and the per-chip block/vmem budget).
    x_big = jax.random.normal(jax.random.PRNGKey(1), (4, 256, 2048), dtype=jnp.float32)
    y_big = jax.block_until_ready(identity_activation(x_big))
    assert y_big.shape == x_big.shape and bool(jnp.all(y_big == x_big))

    # Donated / aliased path: donate a private copy so `x` stays valid.
    ident_donated = jax.jit(
        lambda a: identity_activation(a, donate_input=True), donate_argnums=0
    )
    x_copy = jnp.array(x, copy=True)
    y2 = jax.block_until_ready(ident_donated(x_copy))
    assert y2.shape == x.shape and y2.dtype == x.dtype
    assert bool(jnp.all(y2 == x))

    # Non-multiple-of-128 path (small, bf16): whole-block kernel, no padding.
    x_odd = jax.random.normal(jax.random.PRNGKey(2), (3, 5, 7), dtype=jnp.bfloat16)
    y3 = jax.block_until_ready(identity_activation(x_odd))
    assert y3.shape == x_odd.shape and y3.dtype == x_odd.dtype
    assert bool(jnp.all(y3 == x_odd))

    print("KERNEL_OK")
</pallas_src>

<mosaic_0001>
module attributes {stable_mosaic.version = 11 : i64} {
  func.func @_identity_kernel(%arg0: i32, %arg1: memref<16x128xf32, #tpu.memory_space<vmem>>, %arg2: memref<16x128xf32, #tpu.memory_space<vmem>>) attributes {dimension_semantics = [#tpu.dimension_semantics<parallel>], iteration_bounds = array<i64: 1>, scalar_prefetch = 0 : i64, scratch_operands = 0 : i64, tpu.core_type = #tpu.core_type<tc>, window_params = [{transform_indices = @transform_0, window_bounds = array<i64: 16, 128>}, {transform_indices = @transform_1, window_bounds = array<i64: 16, 128>}]} {
    %c0 = arith.constant 0 : index
    %c0_0 = arith.constant 0 : index
    %0 = vector.load %arg1[%c0, %c0_0] : memref<16x128xf32, #tpu.memory_space<vmem>>, vector<16x128xf32>
    %c0_1 = arith.constant 0 : index
    %c0_2 = arith.constant 0 : index
    %1 = vector.load %arg2[%c0_1, %c0_2] : memref<16x128xf32, #tpu.memory_space<vmem>>, vector<16x128xf32>
    tpu.vector_store %arg2[%c0_1, %c0_2], %0 {strides = array<i32>} : memref<16x128xf32, #tpu.memory_space<vmem>>, vector<16x128xf32>,
    return
  }
  func.func @transform_0(%arg0: i32) -> (i32, i32) {
    %c0_i32 = arith.constant 0 : i32
    %c0_i32_0 = arith.constant 0 : i32
    return %arg0, %c0_i32 : i32, i32
  }
  func.func @transform_1(%arg0: i32) -> (i32, i32) {
    %c0_i32 = arith.constant 0 : i32
    %c0_i32_0 = arith.constant 0 : i32
    return %arg0, %c0_i32 : i32, i32
  }
}

</mosaic_0001>

<llo_original>
// kernel: tpu_custom_call.1
$region0: #{tpu_custom_call.1}
  #allocation0 [shape = 'u32[]', space=smem, size = 0x4, offset = 0x4, fixed_abs, tag = 'smem constant byte address 0x4 - core index']
  #allocation1 [shape = 'u32[72,128]{1,0:T(1,128)}', space=vmem, size = 0x9000, scoped, tag = 'internal scratch']
  %s0 = inlined_call_operand.hbm [shape: f32[16,128], index: 0, kind: input, shape index: {}]
  %s1 = inlined_call_operand.hbm [shape: f32[16,128], index: 1, kind: output, shape index: {}]
  %s2 = sld [smem:[#allocation0]]
  $region18: #{tpu_custom_call.1} parent=0
    _
  %s4 = ssub.s32 1, %s2
  %s5 = scalar_select 0, %s4, %s2
  $region1: #{tpu_custom_call.1} parent=0
    #allocation2 [shape = 'u8[8192]{0}', space=vmem, size = 0x2000, scoped, tag = 'input window, operand 0, single buffered']
    #allocation3 [shape = 's32[1]{0}', space=sflag, size = 0x4, scoped, tag = 'scoped memory for tpu_custom_call.1']
    #allocation4 [shape = 's32[1]{0}', space=sflag, size = 0x4, scoped, tag = 'scoped memory for tpu_custom_call.1']
    #allocation5 [shape = 'u8[8192]{0}', space=vmem, size = 0x2000, scoped, tag = 'output window, operand 0, single buffered']
    %6 = vsyncpa [#allocation3], 0
    %7 = vsyncpa [#allocation4], 0
    // Predicated region
    $region2: #{tpu_custom_call.1} parent=1 // pred_check
      _
    $region3: #{tpu_custom_call.1} parent=1 // pred_check_branch
      %9 = sbr.rel (0) target = $region5
    $region4: #{tpu_custom_call.1} parent=1 // pred_region
      %11 = vsyncadd [#allocation3], 0
      %s12 = sshll.u32 %s0, 4
      %s13 = int_to_ptr.hbm [resolvable:$true] %s12
      %s14 = sshll.u32 [#allocation2], 4
      %s15 = int_to_ptr.vmem [resolvable:$true] %s14
      %20 = dma.hbm_to_vmem [thread:$0]  %s13, 256, %s15, [#allocation3], 128, 128, 8
    $region5: #{tpu_custom_call.1} parent=1 // pred_fallthru
      _
    // Predicated region
    $region6: #{tpu_custom_call.1} parent=1 // pred_check
      _
    $region7: #{tpu_custom_call.1} parent=1 // pred_check_branch
      %22 = sbr.rel (0) target = $region9
    $region8: #{tpu_custom_call.1} parent=1 // pred_region
      %24 = dma.done [#allocation3], 256
    $region9: #{tpu_custom_call.1} parent=1 // pred_fallthru
      _
    %v25 = vld [vmem:[#allocation2] sm:$0xff]
    %v26 = vld [vmem:[#allocation2 + $0x8] sm:$0xff]
    %27 = vst [vmem:[#allocation5] sm:$0xff] %v25
    %28 = vst [vmem:[#allocation5 + $0x8] sm:$0xff] %v26
    // Predicated region
    $region10: #{tpu_custom_call.1} parent=1 // pred_check
      _
    $region11: #{tpu_custom_call.1} parent=1 // pred_check_branch
      %30 = sbr.rel (0) target = $region13
    $region12: #{tpu_custom_call.1} parent=1 // pred_region
      %32 = vsyncadd [#allocation4], 0
      %s33 = sshll.u32 [#allocation5], 4
      %s34 = int_to_ptr.vmem [resolvable:$true] %s33
      %s35 = sshll.u32 %s1, 4
      %s36 = int_to_ptr.hbm [resolvable:$true] %s35
      %41 = dma.vmem_to_hbm [thread:$0]  %s34, 256, %s36, [#allocation4], 128, 128, 8
    $region13: #{tpu_custom_call.1} parent=1 // pred_fallthru
      _
    // Predicated region
    $region14: #{tpu_custom_call.1} parent=1 // pred_check
      _
    $region15: #{tpu_custom_call.1} parent=1 // pred_check_branch
      %43 = sbr.rel (0) target = $region17
    $region16: #{tpu_custom_call.1} parent=1 // pred_region
      %45 = dma.done [#allocation4], 256
    $region17: #{tpu_custom_call.1} parent=1 // pred_fallthru
      _
    %46 = vsyncpa [#allocation3], 1
    %47 = vsyncpa [#allocation4], 1

</llo_original>
